<compile_context>
chip_gen: v7x
topology: tpu7x:2x2x1
jax: 0.10.0
libtpu: 0.0.40
codegen_flags: <defaults>
</compile_context>

<pallas_src>
import functools

import jax
import jax.numpy as jnp
from jax.experimental import pallas as pl
from jax.experimental.pallas import tpu as pltpu


def _dsconv_kernel(x_ref, wdw_ref, wpw_ref, beff_ref, o_ref, *,
                   K, stride, padding, L, L_out, Bt, use_mxu, mxu_bf16):
    # x_ref:    (Bt, C, L)       Bt batch elements (unpadded input)
    # wdw_ref:  (C, K)           depthwise weights
    # wpw_ref:  (O, C)           pointwise weights (pre-cast in wrapper)
    # beff_ref: (O, 1)           folded bias  (w_pw @ b_dw + b_pw)
    # o_ref:    (Bt, O, L_out)
    C = wdw_ref.shape[0]
    wdw = wdw_ref[...].astype(jnp.float32)[None, :, :]        # (1, C, K)

    # ---- depthwise: K taps read straight from x_ref, f32 accumulation in values ----
    dw = None
    for k in range(K):                                        # K small & static -> unrolled
        off = k - padding                                     # src col for out j is j*stride + off
        j_lo = max(0, -(off // stride))                       # first in-bounds output col
        j_hi = min(L_out - 1, (L - 1 - off) // stride)        # last in-bounds output col
        if j_hi < j_lo:
            continue                                          # tap lies entirely in the zero pad
        n = j_hi - j_lo + 1
        src = j_lo * stride + off                             # static, >= 0
        if stride == 1:
            xk = x_ref[:, :, pl.ds(src, n)]                   # contiguous tap read
        else:
            span = (n - 1) * stride + 1
            xk = x_ref[:, :, pl.ds(src, span)][:, :, ::stride]  # subsample before the FMA
        contrib = xk.astype(jnp.float32) * wdw[:, :, k:k + 1]
        if n != L_out:                                        # clipped edge tap: place via lane-concat
            pieces = []
            if j_lo > 0:
                pieces.append(jnp.zeros((Bt, C, j_lo), jnp.float32))
            pieces.append(contrib)
            if j_hi < L_out - 1:
                pieces.append(jnp.zeros((Bt, C, L_out - 1 - j_hi), jnp.float32))
            contrib = jnp.concatenate(pieces, axis=-1)
        dw = contrib if dw is None else dw + contrib
    if dw is None:                                            # pathological padding >= receptive span
        dw = jnp.zeros((Bt, C, L_out), jnp.float32)

    # ---- pointwise 1x1 + folded bias ----
    beff = beff_ref[...].astype(jnp.float32)                  # (O, 1)
    for b in range(Bt):                                       # Bt small & static -> unrolled
        dwb = dw[b]                                           # (C, L_out)
        if use_mxu:
            lhs = wpw_ref[...] if mxu_bf16 else wpw_ref[...].astype(jnp.float32)
            rhs = dwb.astype(jnp.bfloat16) if mxu_bf16 else dwb
            out = jnp.dot(lhs, rhs, preferred_element_type=jnp.float32)
        else:
            # Tiny contraction dim: C broadcast-FMAs on the VPU beat MXU latency.
            wpw = wpw_ref[...].astype(jnp.float32)            # (O, C)
            out = wpw[:, 0:1] * dwb[0:1, :]
            for c in range(1, C):
                out = out + wpw[:, c:c + 1] * dwb[c:c + 1, :]
        o_ref[b] = (out + beff).astype(o_ref.dtype)


def _pick_batch_tile(B, L_out):
    # Fold batch elements into one grid step when L_out is narrow (fewer ~0.35us grid
    # steps, fatter lanes for the pointwise rhs), but keep >= 2 grid steps when B >= 2
    # so the batch axis can be split across both v7x TensorCores.
    target = max(1, 128 // max(1, L_out))
    if B >= 2:
        target = min(target, B // 2)
    target = max(1, min(target, B))
    for bt in range(target, 0, -1):
        if B % bt == 0:
            return bt
    return 1


def depthwise_separable_conv(x, w_dw, b_dw, w_pw, b_pw, *, stride=1, padding=None,
                             allow_bf16=False):
    """Forward of DepthwiseSeparableConv (transpose=False).

    x: (B, C, L); w_dw: (C, K) (PyTorch depthwise weight (C,1,K) squeezed);
    b_dw: (C,); w_pw: (O, C) (PyTorch pointwise weight (O,C,1) squeezed); b_pw: (O,).
    """
    B, C, L = x.shape
    Cw, K = w_dw.shape
    O = w_pw.shape[0]
    assert Cw == C and w_pw.shape[1] == C
    if padding is None:
        padding = K // 2
    L_out = (L + 2 * padding - K) // stride + 1
    assert L_out > 0

    # Fold depthwise bias into the pointwise bias (exact, done once in the wrapper).
    b_eff = (jnp.dot(w_pw.astype(jnp.float32), b_dw.astype(jnp.float32),
                     precision=jax.lax.Precision.HIGHEST)
             + b_pw.astype(jnp.float32)).reshape(O, 1)

    use_mxu = C >= 8
    mxu_bf16 = bool(allow_bf16) and use_mxu and C >= 128      # looser numerics; opt-in only
    w_pw_arg = w_pw.astype(jnp.bfloat16 if mxu_bf16 else jnp.float32)

    Bt = _pick_batch_tile(B, L_out)
    nb = B // Bt

    kernel = functools.partial(_dsconv_kernel, K=K, stride=stride, padding=padding,
                               L=L, L_out=L_out, Bt=Bt, use_mxu=use_mxu,
                               mxu_bf16=mxu_bf16)

    # VMEM budget: double-buffered in/out blocks + weights + f32 temporaries, with slack.
    itemsize = jnp.dtype(x.dtype).itemsize
    need = (2 * Bt * C * L * itemsize
            + 2 * Bt * O * L_out * itemsize
            + 4 * Bt * C * L_out * 4
            + (C * K + O * C + O) * 4)
    vmem_limit = int(min(max(need + (4 << 20), 16 << 20), 100 << 20))

    return pl.pallas_call(
        kernel,
        out_shape=jax.ShapeDtypeStruct((B, O, L_out), x.dtype),
        grid_spec=pltpu.PrefetchScalarGridSpec(
            num_scalar_prefetch=0,
            grid=(nb,),
            in_specs=[
                pl.BlockSpec((Bt, C, L), lambda b: (b, 0, 0)),
                pl.BlockSpec((C, K), lambda b: (0, 0)),
                pl.BlockSpec((O, C), lambda b: (0, 0)),
                pl.BlockSpec((O, 1), lambda b: (0, 0)),
            ],
            out_specs=pl.BlockSpec((Bt, O, L_out), lambda b: (b, 0, 0)),
        ),
        compiler_params=pltpu.CompilerParams(
            dimension_semantics=("parallel",),
            vmem_limit_bytes=vmem_limit,
        ),
    )(x, w_dw, w_pw_arg, b_eff)


def _reference(x, w_dw, b_dw, w_pw, b_pw, *, stride=1, padding=None):
    """Pure-JAX reference matching PyTorch Conv1d(groups=C) + Conv1d(1x1)."""
    B, C, L = x.shape
    _, K = w_dw.shape
    if padding is None:
        padding = K // 2
    L_out = (L + 2 * padding - K) // stride + 1
    xp = jnp.pad(x.astype(jnp.float32), ((0, 0), (0, 0), (padding, padding)))
    span = (L_out - 1) * stride + 1
    dw = jnp.zeros((B, C, L_out), jnp.float32)
    for k in range(K):
        dw = dw + xp[:, :, k:k + span:stride] * w_dw[None, :, k:k + 1]
    dw = dw + b_dw[None, :, None]
    out = jnp.einsum("oc,bcl->bol", w_pw.astype(jnp.float32), dw,
                     precision=jax.lax.Precision.HIGHEST) + b_pw[None, :, None]
    return out


if __name__ == "__main__":
    def _run_case(name, B, C_in, C_out, L, K, stride, atol):
        key = jax.random.PRNGKey(0)
        k0, k1, k2, k3, k4 = jax.random.split(key, 5)
        x = jax.random.normal(k0, (B, C_in, L), dtype=jnp.float32)
        # PyTorch depthwise weight (C_in, 1, K) -> (C_in, K); pointwise (C_out, C_in, 1) -> (C_out, C_in).
        w_dw = jax.random.normal(k1, (C_in, K), dtype=jnp.float32) * 0.1
        b_dw = jax.random.normal(k2, (C_in,), dtype=jnp.float32) * 0.1
        w_pw = jax.random.normal(k3, (C_out, C_in), dtype=jnp.float32) * 0.1
        b_pw = jax.random.normal(k4, (C_out,), dtype=jnp.float32) * 0.1

        out = jax.block_until_ready(
            depthwise_separable_conv(x, w_dw, b_dw, w_pw, b_pw, stride=stride))
        ref = _reference(x, w_dw, b_dw, w_pw, b_pw, stride=stride)
        padding = K // 2
        L_out = (L + 2 * padding - K) // stride + 1
        assert out.shape == (B, C_out, L_out), (name, out.shape)
        assert jnp.allclose(out, ref, atol=atol, rtol=atol), f"mismatch vs reference: {name}"

    # Module-default config: small C -> VPU pointwise path, stride=1, padding=K//2.
    _run_case("vpu_s1", B=2, C_in=4, C_out=8, L=16, K=3, stride=1, atol=1e-5)
    # MXU pointwise path with a batch-folded grid step (Bt=2, grid=(2,)).
    _run_case("mxu_s1", B=4, C_in=32, C_out=32, L=32, K=3, stride=1, atol=1e-4)
    # stride=2 with odd length: exercises strided-tap subsampling and edge clipping.
    _run_case("vpu_s2", B=2, C_in=4, C_out=8, L=17, K=5, stride=2, atol=1e-5)

    print("KERNEL_OK")
</pallas_src>

<mosaic_0001>
module attributes {stable_mosaic.version = 11 : i64} {
  func.func @_dsconv_kernel(%arg0: i32, %arg1: memref<1x4x16xf32, #tpu.memory_space<vmem>>, %arg2: memref<4x3xf32, #tpu.memory_space<vmem>>, %arg3: memref<8x4xf32, #tpu.memory_space<vmem>>, %arg4: memref<8x1xf32, #tpu.memory_space<vmem>>, %arg5: memref<1x8x16xf32, #tpu.memory_space<vmem>>) attributes {dimension_semantics = [#tpu.dimension_semantics<parallel>], iteration_bounds = array<i64: 2>, scalar_prefetch = 0 : i64, scratch_operands = 0 : i64, tpu.core_type = #tpu.core_type<tc>, window_params = [{transform_indices = @transform_0, window_bounds = array<i64: 1, 4, 16>}, {pipeline_mode = #tpu.pipeline_mode<synchronous>, transform_indices = @transform_1, window_bounds = array<i64: 4, 3>}, {pipeline_mode = #tpu.pipeline_mode<synchronous>, transform_indices = @transform_2, window_bounds = array<i64: 8, 4>}, {pipeline_mode = #tpu.pipeline_mode<synchronous>, transform_indices = @transform_3, window_bounds = array<i64: 8, 1>}, {transform_indices = @transform_4, window_bounds = array<i64: 1, 8, 16>}]} {
    %c0 = arith.constant 0 : index
    %c0_0 = arith.constant 0 : index
    %0 = vector.load %arg2[%c0, %c0_0] : memref<4x3xf32, #tpu.memory_space<vmem>>, vector<4x3xf32>
    %1 = vector.shape_cast %0 : vector<4x3xf32> to vector<1x4x3xf32>
    %c0_1 = arith.constant 0 : index
    %c0_2 = arith.constant 0 : index
    %c0_3 = arith.constant 0 : index
    %2 = vector.load %arg1[%c0_1, %c0_2, %c0_3] : memref<1x4x16xf32, #tpu.memory_space<vmem>>, vector<1x4x15xf32>
    %3 = vector.extract_strided_slice %1 {offsets = [0, 0, 0], sizes = [1, 4, 1], strides = [1, 1, 1]} : vector<1x4x3xf32> to vector<1x4x1xf32>
    %4 = vector.broadcast %3 : vector<1x4x1xf32> to vector<1x4x15xf32>
    %5 = arith.mulf %2, %4 : vector<1x4x15xf32>
    %cst = arith.constant 0.000000e+00 : f32
    %6 = vector.broadcast %cst : f32 to vector<1x4x1xf32>
    %7 = tpu.concatenate %6, %5 in 2 : vector<1x4x1xf32>, vector<1x4x15xf32> -> vector<1x4x16xf32>
    %c0_4 = arith.constant 0 : index
    %c0_5 = arith.constant 0 : index
    %c0_6 = arith.constant 0 : index
    %8 = vector.load %arg1[%c0_4, %c0_5, %c0_6] : memref<1x4x16xf32, #tpu.memory_space<vmem>>, vector<1x4x16xf32>
    %9 = vector.extract_strided_slice %1 {offsets = [0, 0, 1], sizes = [1, 4, 1], strides = [1, 1, 1]} : vector<1x4x3xf32> to vector<1x4x1xf32>
    %10 = vector.broadcast %9 : vector<1x4x1xf32> to vector<1x4x16xf32>
    %11 = arith.mulf %8, %10 : vector<1x4x16xf32>
    %12 = arith.addf %7, %11 : vector<1x4x16xf32>
    %c0_7 = arith.constant 0 : index
    %c0_8 = arith.constant 0 : index
    %c1 = arith.constant 1 : index
    %13 = vector.load %arg1[%c0_7, %c0_8, %c1] : memref<1x4x16xf32, #tpu.memory_space<vmem>>, vector<1x4x15xf32>
    %14 = vector.extract_strided_slice %1 {offsets = [0, 0, 2], sizes = [1, 4, 1], strides = [1, 1, 1]} : vector<1x4x3xf32> to vector<1x4x1xf32>
    %15 = vector.broadcast %14 : vector<1x4x1xf32> to vector<1x4x15xf32>
    %16 = arith.mulf %13, %15 : vector<1x4x15xf32>
    %cst_9 = arith.constant 0.000000e+00 : f32
    %17 = vector.broadcast %cst_9 : f32 to vector<1x4x1xf32>
    %18 = tpu.concatenate %16, %17 in 2 : vector<1x4x15xf32>, vector<1x4x1xf32> -> vector<1x4x16xf32>
    %19 = arith.addf %12, %18 : vector<1x4x16xf32>
    %c0_10 = arith.constant 0 : index
    %c0_11 = arith.constant 0 : index
    %20 = vector.load %arg4[%c0_10, %c0_11] : memref<8x1xf32, #tpu.memory_space<vmem>>, vector<8x1xf32>
    %21 = vector.shape_cast %19 : vector<1x4x16xf32> to vector<4x16xf32>
    %c0_12 = arith.constant 0 : index
    %c0_13 = arith.constant 0 : index
    %22 = vector.load %arg3[%c0_12, %c0_13] : memref<8x4xf32, #tpu.memory_space<vmem>>, vector<8x4xf32>
    %23 = vector.extract_strided_slice %22 {offsets = [0, 0], sizes = [8, 1], strides = [1, 1]} : vector<8x4xf32> to vector<8x1xf32>
    %24 = vector.extract_strided_slice %21 {offsets = [0, 0], sizes = [1, 16], strides = [1, 1]} : vector<4x16xf32> to vector<1x16xf32>
    %25 = vector.broadcast %23 : vector<8x1xf32> to vector<8x16xf32>
    %26 = vector.broadcast %24 : vector<1x16xf32> to vector<8x16xf32>
    %27 = arith.mulf %25, %26 : vector<8x16xf32>
    %28 = vector.extract_strided_slice %22 {offsets = [0, 1], sizes = [8, 1], strides = [1, 1]} : vector<8x4xf32> to vector<8x1xf32>
    %29 = vector.extract_strided_slice %21 {offsets = [1, 0], sizes = [1, 16], strides = [1, 1]} : vector<4x16xf32> to vector<1x16xf32>
    %30 = vector.broadcast %28 : vector<8x1xf32> to vector<8x16xf32>
    %31 = vector.broadcast %29 : vector<1x16xf32> to vector<8x16xf32>
    %32 = arith.mulf %30, %31 : vector<8x16xf32>
    %33 = arith.addf %27, %32 : vector<8x16xf32>
    %34 = vector.extract_strided_slice %22 {offsets = [0, 2], sizes = [8, 1], strides = [1, 1]} : vector<8x4xf32> to vector<8x1xf32>
    %35 = vector.extract_strided_slice %21 {offsets = [2, 0], sizes = [1, 16], strides = [1, 1]} : vector<4x16xf32> to vector<1x16xf32>
    %36 = vector.broadcast %34 : vector<8x1xf32> to vector<8x16xf32>
    %37 = vector.broadcast %35 : vector<1x16xf32> to vector<8x16xf32>
    %38 = arith.mulf %36, %37 : vector<8x16xf32>
    %39 = arith.addf %33, %38 : vector<8x16xf32>
    %40 = vector.extract_strided_slice %22 {offsets = [0, 3], sizes = [8, 1], strides = [1, 1]} : vector<8x4xf32> to vector<8x1xf32>
    %41 = vector.extract_strided_slice %21 {offsets = [3, 0], sizes = [1, 16], strides = [1, 1]} : vector<4x16xf32> to vector<1x16xf32>
    %42 = vector.broadcast %40 : vector<8x1xf32> to vector<8x16xf32>
    %43 = vector.broadcast %41 : vector<1x16xf32> to vector<8x16xf32>
    %44 = arith.mulf %42, %43 : vector<8x16xf32>
    %45 = arith.addf %39, %44 : vector<8x16xf32>
    %46 = vector.broadcast %20 : vector<8x1xf32> to vector<8x16xf32>
    %47 = arith.addf %45, %46 : vector<8x16xf32>
    %c0_14 = arith.constant 0 : index
    %c0_15 = arith.constant 0 : index
    %c0_16 = arith.constant 0 : index
    %48 = vector.load %arg5[%c0_14, %c0_15, %c0_16] : memref<1x8x16xf32, #tpu.memory_space<vmem>>, vector<1x8x16xf32>
    %49 = vector.shape_cast %48 : vector<1x8x16xf32> to vector<8x16xf32>
    %50 = vector.shape_cast %47 : vector<8x16xf32> to vector<1x8x16xf32>
    tpu.vector_store %arg5[%c0_14, %c0_15, %c0_16], %50 {strides = array<i32>} : memref<1x8x16xf32, #tpu.memory_space<vmem>>, vector<1x8x16xf32>,
    return
  }
  func.func @transform_0(%arg0: i32) -> (i32, i32, i32) {
    %c0_i32 = arith.constant 0 : i32
    %c0_i32_0 = arith.constant 0 : i32
    %c0_i32_1 = arith.constant 0 : i32
    return %arg0, %c0_i32, %c0_i32_0 : i32, i32, i32
  }
  func.func @transform_1(%arg0: i32) -> (i32, i32) {
    %c0_i32 = arith.constant 0 : i32
    %c0_i32_0 = arith.constant 0 : i32
    %c0_i32_1 = arith.constant 0 : i32
    return %c0_i32, %c0_i32_0 : i32, i32
  }
  func.func @transform_2(%arg0: i32) -> (i32, i32) {
    %c0_i32 = arith.constant 0 : i32
    %c0_i32_0 = arith.constant 0 : i32
    %c0_i32_1 = arith.constant 0 : i32
    return %c0_i32, %c0_i32_0 : i32, i32
  }
  func.func @transform_3(%arg0: i32) -> (i32, i32) {
    %c0_i32 = arith.constant 0 : i32
    %c0_i32_0 = arith.constant 0 : i32
    %c0_i32_1 = arith.constant 0 : i32
    return %c0_i32, %c0_i32_0 : i32, i32
  }
  func.func @transform_4(%arg0: i32) -> (i32, i32, i32) {
    %c0_i32 = arith.constant 0 : i32
    %c0_i32_0 = arith.constant 0 : i32
    %c0_i32_1 = arith.constant 0 : i32
    return %arg0, %c0_i32, %c0_i32_0 : i32, i32, i32
  }
}

</mosaic_0001>

<llo_original>
// kernel: tpu_custom_call.1
$region0: #{tpu_custom_call.1}
  #allocation0 [shape = 'u32[]', space=smem, size = 0x4, offset = 0x4, fixed_abs, tag = 'smem constant byte address 0x4 - core index']
  #allocation1 [shape = 'u32[144,128]{1,0:T(1,128)}', space=vmem, size = 0x12000, scoped, tag = 'internal scratch']
  %s0 = inlined_call_operand.vmem [shape: f32[2,4,16], index: 0, kind: input, shape index: {}]
  %s1 = inlined_call_operand.vmem [shape: f32[4,3], index: 1, kind: input, shape index: {}]
  %s2 = inlined_call_operand.vmem [shape: f32[8,4], index: 2, kind: input, shape index: {}]
  %s3 = inlined_call_operand.vmem [shape: f32[8,1], index: 3, kind: input, shape index: {}]
  %s4 = inlined_call_operand.hbm [shape: f32[2,8,16], index: 4, kind: output, shape index: {}]
  %s5 = sld [smem:[#allocation0]]
  $region49: #{tpu_custom_call.1} parent=0
    _
  %s7 = ssub.s32 1, %s5
  %s8 = scalar_select 0, %s7, %s5
  $region1: #{tpu_custom_call.1} parent=0
    #allocation2 [shape = 'u8[8192]{0}', space=vmem, size = 0x2000, scoped, tag = 'output window, operand 0']
    #allocation3 [shape = 's32[2]{0}', space=sflag, size = 0x8, scoped, tag = 'scoped memory for tpu_custom_call.1']
    %9 = vsyncpa [#allocation3], 0
    %s10 = scalar_lea.sflag [#allocation3], 1
    %11 = vsyncpa %s10, 0
    loop: start=0, step=1, limit=4
    $region2: #{tpu_custom_call.1} parent=1 // loop_pre_header
      _
    $region3: #{tpu_custom_call.1} parent=1 // loop_header
      %s13 = sphi 0, %s17
      %p14 = scmp.ge.s32.totalorder %s13, 4
      %s23 = sphi 0, %s25
      %s26 = sphi 0, %s23
      %s27 = sphi 0, %s26
      %s43 = sphi 0, %s27
      %s47 = sphi 0, %s47
      %s49 = sphi 0, %s47
      %s50 = sphi 0, %s49
      %s64 = sphi 0, %s50
      %s68 = sphi 0, %s68
      %s70 = sphi 0, %s68
      %s71 = sphi 0, %s70
      %s85 = sphi 0, %s71
      %s89 = sphi 0, %s89
      %s91 = sphi 0, %s89
      %s92 = sphi 0, %s91
      %s106 = sphi 0, %s92
      %s112 = sphi 0, %s114
      %s115 = sphi 0, %s112
      %s116 = sphi 0, %s115
      %s132 = sphi 0, %s116
    $region4: #{tpu_custom_call.1} parent=1 // loop_header_branch
      %16 = sbr.rel (%p14) target = $region8
    $region5: #{tpu_custom_call.1} parent=1 // loop_body
      %s18 = ssub.s32 %s13, 1
      %s19 = ssub.s32 %s13, 2
      %s20 = sadd.s32 %s13, 1
      %s21 = ssub.s32 %s13, %s20
      %p22 = scmp.eq.s32.totalorder %s21, 0
      %s24 = sadd.s32 %s23, 1
      %s25 = scalar_select %p22, %s23, %s24
      %p28 = pneg %p22
      %p29 = scmp.eq.s32.totalorder %s13, 1
      %p30 = por %p28, %p29
      %p31 = scmp.ne.s32.totalorder %s23, %s26
      %p32 = scmp.eq.s32.totalorder %s13, 0
      %p33 = por %p31, %p32
      %p34 = scmp.ne.s32.totalorder %s23, %s26
      %p35 = scmp.eq.s32.totalorder %s18, 1
      %p36 = por %p34, %p35
      %p37 = scmp.ne.s32.totalorder %s26, %s27
      %p38 = scmp.eq.s32.totalorder %s18, 0
      %p39 = por %p37, %p38
      %p40 = scmp.ne.s32.totalorder %s26, %s27
      %p41 = scmp.eq.s32.totalorder %s19, 1
      %p42 = por %p40, %p41
      %p44 = scmp.ne.s32.totalorder %s27, %s43
      %p45 = scmp.eq.s32.totalorder %s19, 0
      %p46 = por %p44, %p45
      %s48 = sadd.s32 %s47, 1
      %p51 = scmp.eq.s32.totalorder %s13, 1
      %p52 = scmp.ne.s32.totalorder %s47, %s49
      %p53 = scmp.eq.s32.totalorder %s13, 0
      %p54 = por %p52, %p53
      %p55 = scmp.ne.s32.totalorder %s47, %s49
      %p56 = scmp.eq.s32.totalorder %s18, 1
      %p57 = por %p55, %p56
      %p58 = scmp.ne.s32.totalorder %s49, %s50
      %p59 = scmp.eq.s32.totalorder %s18, 0
      %p60 = por %p58, %p59
      %p61 = scmp.ne.s32.totalorder %s49, %s50
      %p62 = scmp.eq.s32.totalorder %s19, 1
      %p63 = por %p61, %p62
      %p65 = scmp.ne.s32.totalorder %s50, %s64
      %p66 = scmp.eq.s32.totalorder %s19, 0
      %p67 = por %p65, %p66
      %s69 = sadd.s32 %s68, 1
      %p72 = scmp.eq.s32.totalorder %s13, 1
      %p73 = scmp.ne.s32.totalorder %s68, %s70
      %p74 = scmp.eq.s32.totalorder %s13, 0
      %p75 = por %p73, %p74
      %p76 = scmp.ne.s32.totalorder %s68, %s70
      %p77 = scmp.eq.s32.totalorder %s18, 1
      %p78 = por %p76, %p77
      %p79 = scmp.ne.s32.totalorder %s70, %s71
      %p80 = scmp.eq.s32.totalorder %s18, 0
      %p81 = por %p79, %p80
      %p82 = scmp.ne.s32.totalorder %s70, %s71
      %p83 = scmp.eq.s32.totalorder %s19, 1
      %p84 = por %p82, %p83
      %p86 = scmp.ne.s32.totalorder %s71, %s85
      %p87 = scmp.eq.s32.totalorder %s19, 0
      %p88 = por %p86, %p87
      %s90 = sadd.s32 %s89, 1
      %p93 = scmp.eq.s32.totalorder %s13, 1
      %p94 = scmp.ne.s32.totalorder %s89, %s91
      %p95 = scmp.eq.s32.totalorder %s13, 0
      %p96 = por %p94, %p95
      %p97 = scmp.ne.s32.totalorder %s89, %s91
      %p98 = scmp.eq.s32.totalorder %s18, 1
      %p99 = por %p97, %p98
      %p100 = scmp.ne.s32.totalorder %s91, %s92
      %p101 = scmp.eq.s32.totalorder %s18, 0
      %p102 = por %p100, %p101
      %p103 = scmp.ne.s32.totalorder %s91, %s92
      %p104 = scmp.eq.s32.totalorder %s19, 1
      %p105 = por %p103, %p104
      %p107 = scmp.ne.s32.totalorder %s92, %s106
      %p108 = scmp.eq.s32.totalorder %s19, 0
      %p109 = por %p107, %p108
      %s110 = ssub.s32 %s13, %s20
      %p111 = scmp.eq.s32.totalorder %s110, 0
      %s113 = sadd.s32 %s112, 1
      %s114 = scalar_select %p111, %s112, %s113
      %p117 = pneg %p111
      %p118 = scmp.eq.s32.totalorder %s13, 1
      %p119 = por %p117, %p118
      %p120 = scmp.ne.s32.totalorder %s112, %s115
      %p121 = scmp.eq.s32.totalorder %s13, 0
      %p122 = por %p120, %p121
      %p123 = scmp.ne.s32.totalorder %s112, %s115
      %p124 = scmp.eq.s32.totalorder %s18, 1
      %p125 = por %p123, %p124
      %p126 = scmp.ne.s32.totalorder %s115, %s116
      %p127 = scmp.eq.s32.totalorder %s18, 0
      %p128 = por %p126, %p127
      %p129 = scmp.ne.s32.totalorder %s115, %s116
      %p130 = scmp.eq.s32.totalorder %s19, 1
      %p131 = por %p129, %p130
      %p133 = scmp.ne.s32.totalorder %s116, %s132
      %p134 = scmp.eq.s32.totalorder %s19, 0
      %p135 = por %p133, %p134
      %p136 = scmp.le.s32.totalorder 1, %s13
      %p137 = scmp.lt.s32.totalorder %s13, 3
      %p138 = pnand %p136, %p137
      %p139 = pneg %p138
      // Predicated region
      $region9: #{tpu_custom_call.1} parent=5 // pred_check
        _
      $region10: #{tpu_custom_call.1} parent=5 // pred_check_branch
        %141 = sbr.rel (%p138) target = $region12
      $region11: #{tpu_custom_call.1} parent=5 // pred_region
        %s142 = ssub.s32 %s13, 1
        // Predicated region
        $region13: #{tpu_custom_call.1} parent=11 // pred_check
          %p143 = pneg %p60
        $region14: #{tpu_custom_call.1} parent=11 // pred_check_branch
          %145 = sbr.rel (%p143) target = $region16
        $region15: #{tpu_custom_call.1} parent=11 // pred_region
          _
        $region16: #{tpu_custom_call.1} parent=11 // pred_fallthru
          _
        // Predicated region
        $region17: #{tpu_custom_call.1} parent=11 // pred_check
          %p146 = pneg %p81
        $region18: #{tpu_custom_call.1} parent=11 // pred_check_branch
          %148 = sbr.rel (%p146) target = $region20
        $region19: #{tpu_custom_call.1} parent=11 // pred_region
          _
        $region20: #{tpu_custom_call.1} parent=11 // pred_fallthru
          _
        // Predicated region
        $region21: #{tpu_custom_call.1} parent=11 // pred_check
          %p149 = pneg %p102
        $region22: #{tpu_custom_call.1} parent=11 // pred_check_branch
          %151 = sbr.rel (%p149) target = $region24
        $region23: #{tpu_custom_call.1} parent=11 // pred_region
          _
        $region24: #{tpu_custom_call.1} parent=11 // pred_fallthru
          _
      $region12: #{tpu_custom_call.1} parent=5 // pred_fallthru
        _
      %p152 = scmp.lt.s32.totalorder %s13, 2
      // Predicated region
      $region25: #{tpu_custom_call.1} parent=5 // pred_check
        %p153 = pneg %p152
      $region26: #{tpu_custom_call.1} parent=5 // pred_check_branch
        %155 = sbr.rel (%p153) target = $region28
      $region27: #{tpu_custom_call.1} parent=5 // pred_region
        // Predicated region
        $region29: #{tpu_custom_call.1} parent=27 // pred_check
          %p156 = pneg %p33
        $region30: #{tpu_custom_call.1} parent=27 // pred_check_branch
          %158 = sbr.rel (%p156) target = $region32
        $region31: #{tpu_custom_call.1} parent=27 // pred_region
          %p159 = scmp.lt.s32.totalorder %s13, 1
          %s160 = scalar_select %p159, %s13, 1
          %s161 = smul.addr %s160, 4
          %s162 = scalar_lea.vmem %s0, %s161
        $region32: #{tpu_custom_call.1} parent=27 // pred_fallthru
          _
      $region28: #{tpu_custom_call.1} parent=5 // pred_fallthru
        _
      %p163 = scmp.le.s32.totalorder 1, %s13
      %p164 = scmp.lt.s32.totalorder %s13, 3
      %p165 = pnand %p163, %p164
      %p166 = pneg %p165
      // Predicated region
      $region33: #{tpu_custom_call.1} parent=5 // pred_check
        _
      $region34: #{tpu_custom_call.1} parent=5 // pred_check_branch
        %168 = sbr.rel (%p165) target = $region36
      $region35: #{tpu_custom_call.1} parent=5 // pred_region
        %s169 = ssub.s32 %s13, 1
        %p170 = scmp.lt.s32.totalorder %s18, 1
        %s171 = scalar_select %p170, %s18, 1
        %s172 = smul.addr %s171, 4
        %s173 = scalar_lea.vmem %s0, %s172
        %p174 = pneg %p39
        %p175 = pneg %p36
        %p176 = pneg %p60
        %p177 = pneg %p57
        %p178 = pneg %p81
        %p179 = pneg %p78
        %p180 = pneg %p102
        %p181 = pneg %p99
        %p182 = pneg %p128
        %p183 = pneg %p125
        %s184 = sand.u32 %s115, 1
        %s185 = scalar_lea.sflag [#allocation3], %s184
        %s186 = sand.u32 %s115, 1
        %s187 = smul.addr %s186, 8
        %s188 = scalar_lea.vmem [#allocation2], %s187
        %p189 = scmp.lt.s32.totalorder %s18, 1
        %s190 = scalar_select %p189, %s18, 1
        %s191 = smul.addr %s190, 4
        %s192 = scalar_lea.vmem %s0, %s191
        %v193 = vld [vmem:[%s1] sm:$0xf]
        %v194 = vld [vmem:[%s192] sm:$0xf]
        %196 = vset.pattern.permute.xlu0 0
        %197 = vperm.xlu0 %196, %v193
        %v198 = vpop.permute.xlu0 %197
        %v200 = vmul.f32 %v194, %v198
        %202 = vrot.lane.b32.xlu0 %v200, 1
        %v203 = vpop.permute.xlu0 %202
        %vm205 = vcmask 7168
        %v206 = vsel %vm205, 0.0, %v203
        %207 = vset.pattern.permute.xlu0 1
        %208 = vperm.xlu0 %207, %v193
        %v209 = vpop.permute.xlu0 %208
        %v211 = vmul.f32 %v194, %v209
        %v212 = vadd.f32 %v206, %v211
        %213 = vset.pattern.permute.xlu0 2
        %214 = vperm.xlu0 %213, %v193
        %v215 = vpop.permute.xlu0 %214
        %v217 = vmul.f32 %v194, %v215
        %219 = vrot.lane.b32.xlu0 %v217, 127
        %v220 = vpop.permute.xlu0 %219
        %vm222 = vcmask 121856
        %v223 = vsel %vm222, %v220, 0.0
        %v224 = vadd.f32 %v212, %v223
        %v225 = vld [vmem:[%s3] sm:$0xff]
        %v226 = vld [vmem:[%s2] sm:$0xff]
        %228 = vset.pattern.permute.xlu0 0
        %229 = vperm.xlu0 %228, %v226
        %v230 = vpop.permute.xlu0 %229
        %v232 = vlaneseq
        %v233 = vshrl.u32 %v232, 7
        %v234 = vsub.s32 0, %v233
        %v235 = vrot.slane %v224, %v234
        %v236 = vmul.f32 %v230, %v235
        %237 = vset.pattern.permute.xlu0 1
        %238 = vperm.xlu0 %237, %v226
        %v239 = vpop.permute.xlu0 %238
        %v241 = vlaneseq
        %v242 = vshrl.u32 %v241, 7
        %v243 = vsub.s32 1, %v242
        %v244 = vrot.slane %v224, %v243
        %v245 = vmul.f32 %v239, %v244
        %v246 = vadd.f32 %v236, %v245
        %247 = vset.pattern.permute.xlu0 2
        %248 = vperm.xlu0 %247, %v226
        %v249 = vpop.permute.xlu0 %248
        %v251 = vlaneseq
        %v252 = vshrl.u32 %v251, 7
        %v253 = vsub.s32 2, %v252
        %v254 = vrot.slane %v224, %v253
        %v255 = vmul.f32 %v249, %v254
        %v256 = vadd.f32 %v246, %v255
        %257 = vset.pattern.permute.xlu0 3
        %258 = vperm.xlu0 %257, %v226
        %v259 = vpop.permute.xlu0 %258
        %v261 = vlaneseq
        %v262 = vshrl.u32 %v261, 7
        %v263 = vsub.s32 3, %v262
        %v264 = vrot.slane %v224, %v263
        %v265 = vmul.f32 %v259, %v264
        %v266 = vadd.f32 %v256, %v265
        %268 = vset.pattern.permute.xlu0 0
        %269 = vperm.xlu0 %268, %v225
        %v270 = vpop.permute.xlu0 %269
        %v272 = vadd.f32 %v266, %v270
        %vm273 = vcmask 130048
        %274 = vst.msk [vmem:[%s188] sm:$0xff] %vm273, %v272
        %s275 = sand.u32 %s115, 1
        %s276 = scalar_lea.sflag [#allocation3], %s275
        %s277 = sand.u32 %s115, 1
        %s278 = smul.addr %s277, 8
        %s279 = scalar_lea.vmem [#allocation2], %s278
        // Predicated region
        $region37: #{tpu_custom_call.1} parent=35 // pred_check
          %p280 = pneg %p125
        $region38: #{tpu_custom_call.1} parent=35 // pred_check_branch
          %282 = sbr.rel (%p280) target = $region40
        $region39: #{tpu_custom_call.1} parent=35 // pred_region
          %s284 = ssub.s32 128, 128
          %285 = vsyncadd %s276, %s284
          %s286 = smul.addr %s18, 128
          %s287 = scalar_lea.hbm %s4, %s286
          %s289 = sshll.u32 %s279, 4
          %s290 = int_to_ptr.vmem [resolvable:$true] %s289
          %292 = dma.vmem_to_hbm [thread:$0]  %s290, 128, %s287, %s276
        $region40: #{tpu_custom_call.1} parent=35 // pred_fallthru
          _
      $region36: #{tpu_custom_call.1} parent=5 // pred_fallthru
        _
      %p293 = scmp.le.s32.totalorder 2, %s13
      // Predicated region
      $region41: #{tpu_custom_call.1} parent=5 // pred_check
        %p294 = pneg %p293
      $region42: #{tpu_custom_call.1} parent=5 // pred_check_branch
        %296 = sbr.rel (%p294) target = $region44
      $region43: #{tpu_custom_call.1} parent=5 // pred_region
        %s297 = ssub.s32 %s13, 2
        // Predicated region
        $region45: #{tpu_custom_call.1} parent=43 // pred_check
          %p298 = pneg %p131
        $region46: #{tpu_custom_call.1} parent=43 // pred_check_branch
          %300 = sbr.rel (%p298) target = $region48
        $region47: #{tpu_custom_call.1} parent=43 // pred_region
          %s301 = sand.u32 %s116, 1
          %s302 = scalar_lea.sflag [#allocation3], %s301
          %s303 = sand.u32 %s116, 1
          %s304 = smul.addr %s303, 8
          %s305 = scalar_lea.vmem [#allocation2], %s304
          %306 = dma.done %s302, 128
        $region48: #{tpu_custom_call.1} parent=43 // pred_fallthru
          _
      $region44: #{tpu_custom_call.1} parent=5 // pred_fallthru
        _
    $region6: #{tpu_custom_call.1} parent=1 // loop_footer
      %s17 = sadd.s32 1, %s13
    $region7: #{tpu_custom_call.1} parent=1 // loop_footer_branch
      %12 = sbr.rel target = $region3
    $region8: #{tpu_custom_call.1} parent=1 // loop_exit
      _
    %307 = vsyncpa [#allocation3], 1
    %s308 = scalar_lea.sflag [#allocation3], 1
    %309 = vsyncpa %s308, 1

</llo_original>
